<compile_context>
chip_gen: v7x
topology: tpu7x:2x2x1
jax: 0.10.0
libtpu: 0.0.40
codegen_flags: <defaults>
</compile_context>

<pallas_src>
import functools

import jax
import jax.numpy as jnp
from jax.experimental import pallas as pl
from jax.experimental.pallas import tpu as pltpu


def _round_up(x, m):
    return -(-x // m) * m


def attribute_encoder_kernel(idx_ref, fused_ref, out_ref):
    # idx_ref   : (TM, 1)     int32  emotion ids for this token tile (-1 = pad)
    # fused_ref : (E, O_pad)  f32    fused affine table (resident across grid)
    # out_ref   : (TM, O_pad) f32    lane-dense output tile
    idx = idx_ref[...]                                    # (TM, 1)
    tm = idx.shape[0]
    e = fused_ref.shape[0]

    # Embedding lookup of the fused table as a one-hot MXU matmul.
    iota = jax.lax.broadcasted_iota(jnp.int32, (tm, e), 1)
    one_hot = (iota == idx).astype(fused_ref.dtype)       # (TM, E)
    out = jnp.dot(one_hot, fused_ref[...],
                  preferred_element_type=jnp.float32)     # (TM, O_pad)
    out_ref[...] = out.astype(out_ref.dtype)


@functools.partial(jax.jit, static_argnames=("out_size",))
def attribute_encoder_forward(input_emotion, emb_table, w1_t, b1, w2_t, b2,
                              *, out_size):
    """Fold the affine chain into one table, run one lane-dense Pallas matmul."""
    idx = input_emotion.reshape(-1).astype(jnp.int32)     # (N,)
    n = idx.shape[0]                                      # static under jit
    e = emb_table.shape[0]

    # --- Fuse Embedding -> Linear -> Linear into a single (E, O) table. ---
    # fused[i] = (emb[i] @ W1^T + b1) @ W2^T + b2   (valid: no activation between)
    fused = (emb_table @ w1_t + b1) @ w2_t + b2           # (E, O)

    # Lane-dense padding of the output feature dim (multiple of 128 lanes).
    o_pad = _round_up(max(out_size, 128), 128)
    fused_pad = jnp.zeros((e, o_pad), fused.dtype).at[:, :out_size].set(fused)

    # Token tiling: TM matched to the vreg/MXU tile; pad N up, pad ids with -1
    # (-1 gives an all-zero one-hot row -> zero output, sliced away below).
    tm = 128 if n >= 128 else _round_up(n, 8)
    n_pad = _round_up(n, tm)
    idx_pad = jnp.full((n_pad, 1), -1, jnp.int32).at[:n, 0].set(idx)

    grid = (n_pad // tm,)
    flops = 2 * n_pad * e * o_pad
    bytes_accessed = idx_pad.size * 4 + fused_pad.size * 4 + n_pad * o_pad * 4

    # TODO(synk): if E / feature dims ever scale up (esp. on v7x's 64 MiB VMEM),
    # tile E instead of keeping the full fused table resident, and set
    # vmem_limit_bytes explicitly.
    out = pl.pallas_call(
        attribute_encoder_kernel,
        out_shape=jax.ShapeDtypeStruct((n_pad, o_pad), jnp.float32),
        grid_spec=pl.GridSpec(
            grid=grid,
            in_specs=[
                pl.BlockSpec((tm, 1), lambda i: (i, 0)),       # per-tile ids
                pl.BlockSpec((e, o_pad), lambda i: (0, 0)),    # resident table
            ],
            out_specs=pl.BlockSpec((tm, o_pad), lambda i: (i, 0)),
        ),
        compiler_params=pltpu.CompilerParams(
            dimension_semantics=("parallel",)),
        cost_estimate=pl.CostEstimate(
            flops=flops, transcendentals=0, bytes_accessed=bytes_accessed),
    )(idx_pad, fused_pad)

    # Strip padding; PyTorch forward returns shape (1, N, out_size).
    return out[:n, :out_size].reshape(1, n, out_size)


if __name__ == "__main__":
    # Module hyper-parameters (consistent with the nn.Module __init__).
    emotion_num   = 8
    embedding_dim = 32
    hidden_size   = 32
    out_size      = 16

    key = jax.random.PRNGKey(0)
    k_idx, k_emb, k_w1, k_b1, k_w2, k_b2 = jax.random.split(key, 6)

    # Example input: batch of emotion ids, shape (2, 4) -> N = 8 tokens.
    input_emotion = jax.random.randint(k_idx, (2, 4), 0, emotion_num,
                                       dtype=jnp.int32)

    # Synthetic parameters (PyTorch Linear weights are (out, in); pre-transpose
    # so the math is x @ Wt).
    emb_table = jax.random.normal(k_emb, (emotion_num, embedding_dim),
                                  dtype=jnp.float32) * 0.1
    w1 = jax.random.normal(k_w1, (hidden_size, embedding_dim),
                           dtype=jnp.float32) * 0.1
    b1 = jax.random.normal(k_b1, (hidden_size,), dtype=jnp.float32) * 0.1
    w2 = jax.random.normal(k_w2, (out_size, hidden_size),
                           dtype=jnp.float32) * 0.1
    b2 = jax.random.normal(k_b2, (out_size,), dtype=jnp.float32) * 0.1

    w1_t = w1.T                         # (D, H)
    w2_t = w2.T                         # (H, O)

    out = attribute_encoder_forward(input_emotion, emb_table, w1_t, b1,
                                    w2_t, b2, out_size=out_size)
    out = jax.block_until_ready(out)

    # Pure-JAX reference (same semantics as the PyTorch forward, unfused).
    embedded_ref = emb_table[input_emotion.reshape(-1)]              # (N, D)
    hidden_ref = embedded_ref @ w1.T + b1
    out_ref = (hidden_ref @ w2.T + b2).reshape(1, -1, out_size)

    assert out.shape == (1, input_emotion.size, out_size)
    assert jnp.allclose(out, out_ref, atol=1e-5, rtol=1e-5)

    print("KERNEL_OK")
</pallas_src>

<mosaic_0001>
module attributes {stable_mosaic.version = 11 : i64} {
  func.func @attribute_encoder_kernel(%arg0: i32, %arg1: memref<8x1xi32, #tpu.memory_space<vmem>>, %arg2: memref<8x128xf32, #tpu.memory_space<vmem>>, %arg3: memref<8x128xf32, #tpu.memory_space<vmem>>) attributes {dimension_semantics = [#tpu.dimension_semantics<parallel>], iteration_bounds = array<i64: 1>, scalar_prefetch = 0 : i64, scratch_operands = 0 : i64, tpu.core_type = #tpu.core_type<tc>, window_params = [{transform_indices = @transform_0, window_bounds = array<i64: 8, 1>}, {pipeline_mode = #tpu.pipeline_mode<synchronous>, transform_indices = @transform_1, window_bounds = array<i64: 8, 128>}, {transform_indices = @transform_2, window_bounds = array<i64: 8, 128>}]} {
    %c0 = arith.constant 0 : index
    %c0_0 = arith.constant 0 : index
    %0 = vector.load %arg1[%c0, %c0_0] : memref<8x1xi32, #tpu.memory_space<vmem>>, vector<8x1xi32>
    %1 = tpu.iota {dimensions = array<i32: 1>} : vector<8x8xi32>
    %2 = vector.broadcast %0 : vector<8x1xi32> to vector<8x8xi32>
    %3 = arith.cmpi eq, %1, %2 : vector<8x8xi32>
    %4 = arith.extui %3 : vector<8x8xi1> to vector<8x8xi32>
    %5 = arith.sitofp %4 : vector<8x8xi32> to vector<8x8xf32>
    %c0_1 = arith.constant 0 : index
    %c0_2 = arith.constant 0 : index
    %6 = vector.load %arg2[%c0_1, %c0_2] : memref<8x128xf32, #tpu.memory_space<vmem>>, vector<8x128xf32>
    %cst = arith.constant dense<0.000000e+00> : vector<8x128xf32>
    %7 = tpu.matmul %5, %6, %cst {dimension_numbers = #tpu.dot_dimension_numbers<[1], [0], [0], [1], [0, 0, 1, 1], [], []>} : vector<8x8xf32>, vector<8x128xf32>, vector<8x128xf32> -> vector<8x128xf32>
    %c0_3 = arith.constant 0 : index
    %c0_4 = arith.constant 0 : index
    %8 = vector.load %arg3[%c0_3, %c0_4] : memref<8x128xf32, #tpu.memory_space<vmem>>, vector<8x128xf32>
    tpu.vector_store %arg3[%c0_3, %c0_4], %7 {strides = array<i32>} : memref<8x128xf32, #tpu.memory_space<vmem>>, vector<8x128xf32>,
    return
  }
  func.func @transform_0(%arg0: i32) -> (i32, i32) {
    %c0_i32 = arith.constant 0 : i32
    %c0_i32_0 = arith.constant 0 : i32
    return %arg0, %c0_i32 : i32, i32
  }
  func.func @transform_1(%arg0: i32) -> (i32, i32) {
    %c0_i32 = arith.constant 0 : i32
    %c0_i32_0 = arith.constant 0 : i32
    %c0_i32_1 = arith.constant 0 : i32
    return %c0_i32, %c0_i32_0 : i32, i32
  }
  func.func @transform_2(%arg0: i32) -> (i32, i32) {
    %c0_i32 = arith.constant 0 : i32
    %c0_i32_0 = arith.constant 0 : i32
    return %arg0, %c0_i32 : i32, i32
  }
}

</mosaic_0001>

<llo_original>
// kernel: attribute_encoder_forward.1
$region0: #{attribute_encoder_forward.1}
  #allocation0 [shape = 'u32[]', space=smem, size = 0x4, offset = 0x4, fixed_abs, tag = 'smem constant byte address 0x4 - core index']
  #allocation1 [shape = 'u32[144,128]{1,0:T(1,128)}', space=vmem, size = 0x12000, scoped, tag = 'internal scratch']
  %s0 = inlined_call_operand.vmem [shape: s32[8,1], index: 0, kind: input, shape index: {}]
  %s1 = inlined_call_operand.vmem [shape: f32[8,128], index: 1, kind: input, shape index: {}]
  %s2 = inlined_call_operand.vmem [shape: f32[8,128], index: 2, kind: output, shape index: {}]
  %s3 = sld [smem:[#allocation0]]
  $region18: #{attribute_encoder_forward.1} parent=0
    _
  %s5 = ssub.s32 1, %s3
  %s6 = scalar_select 0, %s5, %s3
  // Predicated region
  $region2: #{attribute_encoder_forward.1} parent=0 // pred_check
    _
  $region3: #{attribute_encoder_forward.1} parent=0 // pred_check_branch
    %8 = sbr.rel (0) target = $region5
  $region4: #{attribute_encoder_forward.1} parent=0 // pred_region
    _
  $region5: #{attribute_encoder_forward.1} parent=0 // pred_fallthru
    _
  // Predicated region
  $region6: #{attribute_encoder_forward.1} parent=0 // pred_check
    _
  $region7: #{attribute_encoder_forward.1} parent=0 // pred_check_branch
    %10 = sbr.rel (0) target = $region9
  $region8: #{attribute_encoder_forward.1} parent=0 // pred_region
    _
  $region9: #{attribute_encoder_forward.1} parent=0 // pred_fallthru
    _
  %v11 = vld [vmem:[%s0] sm:$0xff]
  %v12 = vlaneseq
  %v13 = vand.u32 %v12, 127
  %14 = vset.pattern.permute.xlu0 0
  %15 = vperm.xlu0 %14, %v11
  %v16 = vpop.permute.xlu0 %15
  %vm17 = vcmp.eq.s32.totalorder %v13, %v16
  %v18 = vsel %vm17, 1, 0
  %v19 = vcvt.s32.f32 %v18
  %v20 = vld [vmem:[%s1] sm:$0xff]
  %vm21 = vcmask 64512
  %v23 = vsel %vm21, %v19, 0
  %25 = vmatprep.subr.mxu0 0.0
  %26 = vmatpush1.msra.mxu0 %v20
  %27 = vmatprep.subr.mxu0 0.0
  %28 = vmatpush1.msra.mxu0 0.0
  %29 = vmatprep.subr.mxu0 0.0
  %30 = vmatpush1.msra.mxu0 0.0
  %31 = vmatprep.subr.mxu0 0.0
  %32 = vmatpush1.msra.mxu0 0.0
  %33 = vmatprep.subr.mxu0 0.0
  %34 = vmatpush1.msra.mxu0 0.0
  %35 = vmatprep.subr.mxu0 0.0
  %36 = vmatpush1.msra.mxu0 0.0
  %37 = vmatprep.subr.mxu0 0.0
  %38 = vmatpush1.msra.mxu0 0.0
  %39 = vmatprep.subr.mxu0 0.0
  %40 = vmatpush1.msra.mxu0 0.0
  %41 = vmatprep.subr.mxu0 0.0
  %42 = vmatpush1.msra.mxu0 0.0
  %43 = vmatprep.subr.mxu0 0.0
  %44 = vmatpush1.msra.mxu0 0.0
  %45 = vmatprep.subr.mxu0 0.0
  %46 = vmatpush1.msra.mxu0 0.0
  %47 = vmatprep.subr.mxu0 0.0
  %48 = vmatpush1.msra.mxu0 0.0
  %49 = vmatprep.subr.mxu0 0.0
  %50 = vmatpush1.msra.mxu0 0.0
  %51 = vmatprep.subr.mxu0 0.0
  %52 = vmatpush1.msra.mxu0 0.0
  %53 = vmatprep.subr.mxu0 0.0
  %54 = vmatpush1.msra.mxu0 0.0
  %55 = vmatprep.subr.mxu0 0.0
  %56 = vmatpush1.msra.mxu0 0.0
  %57 = vmatprep.subr.mxu0 0.0
  %58 = vmatpush1.msra.mxu0 0.0
  %59 = vmatprep.subr.mxu0 0.0
  %60 = vmatpush1.msra.mxu0 0.0
  %61 = vmatprep.subr.mxu0 0.0
  %62 = vmatpush1.msra.mxu0 0.0
  %63 = vmatprep.subr.mxu0 0.0
  %64 = vmatpush1.msra.mxu0 0.0
  %65 = vmatprep.subr.mxu0 0.0
  %66 = vmatpush1.msra.mxu0 0.0
  %67 = vmatprep.subr.mxu0 0.0
  %68 = vmatpush1.msra.mxu0 0.0
  %69 = vmatprep.subr.mxu0 0.0
  %70 = vmatpush1.msra.mxu0 0.0
  %71 = vmatprep.subr.mxu0 0.0
  %72 = vmatpush1.msra.mxu0 0.0
  %73 = vmatprep.subr.mxu0 0.0
  %74 = vmatpush1.msra.mxu0 0.0
  %75 = vmatprep.subr.mxu0 0.0
  %76 = vmatpush1.msra.mxu0 0.0
  %77 = vmatprep.subr.mxu0 0.0
  %78 = vmatpush1.msra.mxu0 0.0
  %79 = vmatprep.subr.mxu0 0.0
  %80 = vmatpush1.msra.mxu0 0.0
  %81 = vmatprep.subr.mxu0 0.0
  %82 = vmatpush1.msra.mxu0 0.0
  %83 = vmatprep.subr.mxu0 0.0
  %84 = vmatpush1.msra.mxu0 0.0
  %85 = vmatprep.subr.mxu0 0.0
  %86 = vmatpush1.msra.mxu0 0.0
  %87 = vmatprep.subr.mxu0 0.0
  %88 = vmatpush1.msra.mxu0 0.0
  %89 = vmatprep.mubr.f32.mxu0 0.0
  %90 = vmatmul.mubr.f32.gmra.mrb[0].mxu0 %v23
  %v91 = vpop.f32.mrb[0].mxu0
  %v92 = vadd.f32 0.0, %v91
  %v93 = vpop.f32.mrb[0].mxu0
  %94 = vdwg.mxu0
  %95 = vst [vmem:[%s2] sm:$0xff] %v92
  // Predicated region
  $region10: #{attribute_encoder_forward.1} parent=0 // pred_check
    _
  $region11: #{attribute_encoder_forward.1} parent=0 // pred_check_branch
    %97 = sbr.rel (0) target = $region13
  $region12: #{attribute_encoder_forward.1} parent=0 // pred_region
    _
  $region13: #{attribute_encoder_forward.1} parent=0 // pred_fallthru
    _
  // Predicated region
  $region14: #{attribute_encoder_forward.1} parent=0 // pred_check
    _
  $region15: #{attribute_encoder_forward.1} parent=0 // pred_check_branch
    %99 = sbr.rel (0) target = $region17
  $region16: #{attribute_encoder_forward.1} parent=0 // pred_region
    _
  $region17: #{attribute_encoder_forward.1} parent=0 // pred_fallthru
    _

</llo_original>
